<compile_context>
chip_gen: v7x
topology: tpu7x:2x2x1
jax: 0.10.0
libtpu: 0.0.40
codegen_flags: <defaults>
</compile_context>

<pallas_src>
import math

import jax
import jax.numpy as jnp
from jax.experimental import pallas as pl
from jax.experimental.pallas import tpu as pltpu


def make_positional_encoding_table(max_len: int, d_model: int) -> jax.Array:
    """Replicates the PyTorch buffer `pe` as shape (max_len, d_model), f32."""
    position = jnp.arange(max_len, dtype=jnp.float32)[:, None]               # (L, 1)
    sin_div = jnp.exp(jnp.arange(0, d_model, 2, dtype=jnp.float32)
                      * (-math.log(10000.0) / d_model))
    cos_div = jnp.exp(jnp.arange(1, d_model, 2, dtype=jnp.float32)
                      * (-math.log(10000.0) / d_model))
    pe = jnp.zeros((max_len, d_model), dtype=jnp.float32)
    pe = pe.at[:, 0::2].set(jnp.sin(position * sin_div))
    pe = pe.at[:, 1::2].set(jnp.cos(position * cos_div))
    return pe


def _pe_add_kernel(x_ref, pe_ref, o_ref):
    # x_ref / o_ref: (ts, B*D);  pe_ref: (ts, D).
    d = pe_ref.shape[-1]
    b = x_ref.shape[-1] // d
    pe = pe_ref[...]
    # Replicate pe across the batch along the lane axis.  A minor-axis concat
    # lowers to cheap lane copies; the kernel is HBM-bound so it is hidden.
    pe_wide = pe if b == 1 else jnp.concatenate([pe] * b, axis=-1)
    o_ref[...] = x_ref[...].astype(o_ref.dtype) + pe_wide


def _chip_config():
    """(vmem_limit_bytes, min_grid_steps) heuristics per TPU generation."""
    kind = ""
    try:
        kind = jax.devices()[0].device_kind.lower()
    except Exception:
        pass
    if "v7" in kind or "7x" in kind:
        # 64 MiB VMEM per TensorCore, 2 TCs/chip: cap the scoped budget and
        # give each core several pipelined steps when the input is large.
        return 48 * 1024 * 1024, 8
    if "v6" in kind:
        # 128 MiB physical VMEM, 1 TC: big blocks, never force splitting.
        return 64 * 1024 * 1024, 1
    # v5e / unknown: conservative 32 MiB scoped budget, 1 TC.
    return 32 * 1024 * 1024, 1


def _pick_seq_tile(S, B, D, in_itemsize, out_itemsize, vmem_limit_bytes, min_steps):
    """Seq positions per block for x viewed as (S, B*D)."""
    # Live VMEM per seq position: double-buffered x-in + double-buffered out.
    bytes_per_pos = 2 * B * D * (in_itemsize + out_itemsize)
    budget = (vmem_limit_bytes * 3) // 4          # headroom for pe blocks / scratch
    ts = max(1, min(S, budget // max(1, bytes_per_pos)))

    # Only force several grid steps (v7x dual-TC pipelining) when the input is
    # large enough to amortize the ~0.35 us per-step pipeline overhead.
    total_bytes = S * B * D * (in_itemsize + out_itemsize)
    if min_steps > 1 and total_bytes >= (4 << 20):
        ts = min(ts, max(1, pl.cdiv(S, min_steps)))

    if ts >= S:
        return S                                  # single full block is always legal

    # Keep the block's sublane extent a multiple of the packing factor
    # (8 rows f32, 16 rows bf16) so loads/stores stay dense and unmasked.
    sub = 8 * max(1, 4 // max(1, min(in_itemsize, out_itemsize, 4)))
    ts = max(sub, (ts // sub) * sub)
    return min(ts, S)


@jax.jit
def positional_encoding_forward(x: jax.Array, pe_table: jax.Array) -> jax.Array:
    """x: (seq_len, batch, d_model); pe_table: (max_len, d_model) f32."""
    S, B, D = x.shape
    assert S <= pe_table.shape[0], "seq_len must be <= max_len"

    # Match PyTorch promotion (`x + pe` with an f32 buffer): bf16 x -> f32 out.
    out_dtype = jnp.promote_types(x.dtype, pe_table.dtype)
    pe = pe_table[:S].astype(out_dtype)           # (S, D): slice + cast once

    # Free row-major view: seq positions on sublanes, (batch*d_model) on lanes.
    x_flat = x.reshape(S, B * D)

    vmem_limit, min_steps = _chip_config()
    ts = _pick_seq_tile(S, B, D, x.dtype.itemsize, jnp.dtype(out_dtype).itemsize,
                        vmem_limit, min_steps)
    grid = (pl.cdiv(S, ts),)

    out_flat = pl.pallas_call(
        _pe_add_kernel,
        out_shape=jax.ShapeDtypeStruct((S, B * D), out_dtype),
        grid_spec=pl.GridSpec(
            grid=grid,
            in_specs=[
                pl.BlockSpec((ts, B * D), lambda i: (i, 0)),   # x rows (dense, contiguous)
                pl.BlockSpec((ts, D), lambda i: (i, 0)),       # matching pe rows (tiny)
            ],
            out_specs=pl.BlockSpec((ts, B * D), lambda i: (i, 0)),
        ),
        compiler_params=pltpu.CompilerParams(
            dimension_semantics=("parallel",),
            vmem_limit_bytes=vmem_limit,
        ),
    )(x_flat, pe)

    # TODO(synk): Dropout(p>0) in training mode would need pltpu.prng_seed +
    # pltpu.stateful_bernoulli; the module default p=0.0 is the identity.
    # TODO(synk): with a donated/dead x (and matching dtype), pass
    # input_output_aliases={0: 0} to drop the separate HBM output allocation;
    # omitted here since the example input is not donated.
    return out_flat.reshape(S, B, D)


if __name__ == "__main__":
    key = jax.random.PRNGKey(0)
    seq_len, batch, d_model, max_len = 16, 4, 128, 256

    x = jax.random.normal(key, (seq_len, batch, d_model), dtype=jnp.float32)
    pe_table = make_positional_encoding_table(max_len, d_model)

    out = jax.block_until_ready(positional_encoding_forward(x, pe_table))

    # Reference check (plain JAX) mirroring the PyTorch forward.
    ref = x + pe_table[:seq_len][:, None, :]
    assert out.shape == x.shape and out.dtype == ref.dtype
    assert jnp.allclose(out, ref, atol=1e-6, rtol=1e-6)

    print("KERNEL_OK")
</pallas_src>

<mosaic_0001>
module attributes {stable_mosaic.version = 11 : i64} {
  func.func @_pe_add_kernel(%arg0: i32, %arg1: memref<16x512xf32, #tpu.memory_space<vmem>>, %arg2: memref<16x128xf32, #tpu.memory_space<vmem>>, %arg3: memref<16x512xf32, #tpu.memory_space<vmem>>) attributes {dimension_semantics = [#tpu.dimension_semantics<parallel>], iteration_bounds = array<i64: 1>, scalar_prefetch = 0 : i64, scratch_operands = 0 : i64, tpu.core_type = #tpu.core_type<tc>, window_params = [{transform_indices = @transform_0, window_bounds = array<i64: 16, 512>}, {transform_indices = @transform_1, window_bounds = array<i64: 16, 128>}, {transform_indices = @transform_2, window_bounds = array<i64: 16, 512>}]} {
    %c0 = arith.constant 0 : index
    %c0_0 = arith.constant 0 : index
    %0 = vector.load %arg2[%c0, %c0_0] : memref<16x128xf32, #tpu.memory_space<vmem>>, vector<16x128xf32>
    %1 = tpu.concatenate %0, %0, %0, %0 in 1 : vector<16x128xf32>, vector<16x128xf32>, vector<16x128xf32>, vector<16x128xf32> -> vector<16x512xf32>
    %c0_1 = arith.constant 0 : index
    %c0_2 = arith.constant 0 : index
    %2 = vector.load %arg1[%c0_1, %c0_2] : memref<16x512xf32, #tpu.memory_space<vmem>>, vector<16x512xf32>
    %3 = arith.addf %2, %1 : vector<16x512xf32>
    %c0_3 = arith.constant 0 : index
    %c0_4 = arith.constant 0 : index
    %4 = vector.load %arg3[%c0_3, %c0_4] : memref<16x512xf32, #tpu.memory_space<vmem>>, vector<16x512xf32>
    tpu.vector_store %arg3[%c0_3, %c0_4], %3 {strides = array<i32>} : memref<16x512xf32, #tpu.memory_space<vmem>>, vector<16x512xf32>,
    return
  }
  func.func @transform_0(%arg0: i32) -> (i32, i32) {
    %c0_i32 = arith.constant 0 : i32
    %c0_i32_0 = arith.constant 0 : i32
    return %arg0, %c0_i32 : i32, i32
  }
  func.func @transform_1(%arg0: i32) -> (i32, i32) {
    %c0_i32 = arith.constant 0 : i32
    %c0_i32_0 = arith.constant 0 : i32
    return %arg0, %c0_i32 : i32, i32
  }
  func.func @transform_2(%arg0: i32) -> (i32, i32) {
    %c0_i32 = arith.constant 0 : i32
    %c0_i32_0 = arith.constant 0 : i32
    return %arg0, %c0_i32 : i32, i32
  }
}

</mosaic_0001>

<llo_original>
// kernel: positional_encoding_forward.1
$region0: #{positional_encoding_forward.1}
  #allocation0 [shape = 'u32[]', space=smem, size = 0x4, offset = 0x4, fixed_abs, tag = 'smem constant byte address 0x4 - core index']
  #allocation1 [shape = 'u32[144,128]{1,0:T(1,128)}', space=vmem, size = 0x12000, scoped, tag = 'internal scratch']
  %s0 = inlined_call_operand.vmem [shape: f32[16,512], index: 0, kind: input, shape index: {}]
  %s1 = inlined_call_operand.vmem [shape: f32[16,128], index: 1, kind: input, shape index: {}]
  %s2 = inlined_call_operand.vmem [shape: f32[16,512], index: 2, kind: output, shape index: {}]
  %s3 = sld [smem:[#allocation0]]
  $region18: #{positional_encoding_forward.1} parent=0
    _
  %s5 = ssub.s32 1, %s3
  %s6 = scalar_select 0, %s5, %s3
  // Predicated region
  $region2: #{positional_encoding_forward.1} parent=0 // pred_check
    _
  $region3: #{positional_encoding_forward.1} parent=0 // pred_check_branch
    %8 = sbr.rel (0) target = $region5
  $region4: #{positional_encoding_forward.1} parent=0 // pred_region
    _
  $region5: #{positional_encoding_forward.1} parent=0 // pred_fallthru
    _
  // Predicated region
  $region6: #{positional_encoding_forward.1} parent=0 // pred_check
    _
  $region7: #{positional_encoding_forward.1} parent=0 // pred_check_branch
    %10 = sbr.rel (0) target = $region9
  $region8: #{positional_encoding_forward.1} parent=0 // pred_region
    _
  $region9: #{positional_encoding_forward.1} parent=0 // pred_fallthru
    _
  %v11 = vld [vmem:[%s1] sm:$0xff]
  %v12 = vld [vmem:[%s1 + $0x8] sm:$0xff]
  %v13 = vld [vmem:[%s0] sm:$0xff]
  %v14 = vld [vmem:[%s0 + $0x8] sm:$0xff]
  %v15 = vld [vmem:[%s0 + $0x10] sm:$0xff]
  %v16 = vld [vmem:[%s0 + $0x18] sm:$0xff]
  %v17 = vld [vmem:[%s0 + $0x20] sm:$0xff]
  %v18 = vld [vmem:[%s0 + $0x28] sm:$0xff]
  %v19 = vld [vmem:[%s0 + $0x30] sm:$0xff]
  %v20 = vld [vmem:[%s0 + $0x38] sm:$0xff]
  %v21 = vadd.f32 %v13, %v11
  %v22 = vadd.f32 %v14, %v11
  %v23 = vadd.f32 %v15, %v11
  %v24 = vadd.f32 %v16, %v11
  %v25 = vadd.f32 %v17, %v12
  %v26 = vadd.f32 %v18, %v12
  %v27 = vadd.f32 %v19, %v12
  %v28 = vadd.f32 %v20, %v12
  %29 = vst [vmem:[%s2] sm:$0xff] %v21
  %30 = vst [vmem:[%s2 + $0x8] sm:$0xff] %v22
  %31 = vst [vmem:[%s2 + $0x10] sm:$0xff] %v23
  %32 = vst [vmem:[%s2 + $0x18] sm:$0xff] %v24
  %33 = vst [vmem:[%s2 + $0x20] sm:$0xff] %v25
  %34 = vst [vmem:[%s2 + $0x28] sm:$0xff] %v26
  %35 = vst [vmem:[%s2 + $0x30] sm:$0xff] %v27
  %36 = vst [vmem:[%s2 + $0x38] sm:$0xff] %v28
  // Predicated region
  $region10: #{positional_encoding_forward.1} parent=0 // pred_check
    _
  $region11: #{positional_encoding_forward.1} parent=0 // pred_check_branch
    %38 = sbr.rel (0) target = $region13
  $region12: #{positional_encoding_forward.1} parent=0 // pred_region
    _
  $region13: #{positional_encoding_forward.1} parent=0 // pred_fallthru
    _
  // Predicated region
  $region14: #{positional_encoding_forward.1} parent=0 // pred_check
    _
  $region15: #{positional_encoding_forward.1} parent=0 // pred_check_branch
    %40 = sbr.rel (0) target = $region17
  $region16: #{positional_encoding_forward.1} parent=0 // pred_region
    _
  $region17: #{positional_encoding_forward.1} parent=0 // pred_fallthru
    _

</llo_original>
